<compile_context>
chip_gen: v6e
topology: v6e:2x2x1
jax: 0.10.0
libtpu: 0.0.40
codegen_flags: <defaults>
</compile_context>

<pallas_src>
import jax
import jax.numpy as jnp
from jax.experimental import pallas as pl
from jax.experimental.pallas import tpu as pltpu


def _linear_bias_permute_kernel(w_ref, x_ref, o_ref):
    # w_ref: (O, K) = [W | b]   x_ref: (K, S) = [x[0]^T ; ones]   o_ref: (O, S)
    # Entire problem fits in single padded (8,128) vregs -> skip the MXU and
    # unroll the tiny static K contraction as VPU multiply-adds in the output
    # orientation (outer-product accumulation, broadcasts only, no relayouts).
    w = w_ref[...]
    x = x_ref[...]
    K = w_ref.shape[1]
    acc = w[:, 0:1] * x[0:1, :]            # (O,1) * (1,S) -> (O,S)
    for k in range(1, K):                   # K = 4, fully unrolled at trace time
        acc = acc + w[:, k:k + 1] * x[k:k + 1, :]
    o_ref[...] = acc.astype(o_ref.dtype)


def model_forward(x, w, b):
    B, S, F = x.shape
    O, Fw = w.shape
    assert B == 1, "module's squeeze() semantics assume batch == 1"
    assert F == Fw, "last dim of x must equal Linear in_features"
    # .squeeze() removes *all* size-1 dims; this fixed (O, S) output only
    # matches PyTorch when both dims survive the squeeze.
    assert S > 1 and O > 1, "squeeze() would change output rank for S==1 or O==1"

    # Wrapper-side layout plumbing (free at this size):
    #  - fold the bias into the matmul: drops one padded-tile DMA,
    #  - present x as (K, S) so the kernel contracts directly into (O, S).
    x_aug = jnp.concatenate(
        [x.reshape(S, F).T, jnp.ones((1, S), dtype=x.dtype)], axis=0)  # (F+1, S)
    w_aug = jnp.concatenate([w, b.reshape(O, 1)], axis=1)              # (O, F+1)
    K = F + 1

    # Honest cost hint: each ref moves at least one padded (8,128) f32 tile.
    cost = pl.CostEstimate(
        flops=2 * O * K * S,
        transcendentals=0,
        bytes_accessed=3 * 8 * 128 * 4,
    )

    return pl.pallas_call(
        _linear_bias_permute_kernel,
        out_shape=jax.ShapeDtypeStruct((O, S), x.dtype),
        in_specs=[
            pl.BlockSpec(memory_space=pltpu.VMEM),
            pl.BlockSpec(memory_space=pltpu.VMEM),
        ],
        out_specs=pl.BlockSpec(memory_space=pltpu.VMEM),
        cost_estimate=cost,
    )(w_aug, x_aug)


if __name__ == "__main__":
    key = jax.random.PRNGKey(0)
    kx, kw, kb = jax.random.split(key, 3)

    # x consistent with nn.Linear(3, 5): last dim (in_features) = 3
    x = jax.random.normal(kx, (1, 4, 3), dtype=jnp.float32)
    w = jax.random.normal(kw, (5, 3), dtype=jnp.float32) * 0.1
    b = jax.random.normal(kb, (5,), dtype=jnp.float32) * 0.1

    out = jax.block_until_ready(model_forward(x, w, b))

    # reference in plain JAX: (x[0] @ W^T + b)^T, shape (5, 4)
    ref = (x[0] @ w.T + b).T
    assert out.shape == (5, 4), out.shape
    assert jnp.allclose(out, ref, atol=1e-5, rtol=1e-5), "mismatch vs reference"

    print("KERNEL_OK")
</pallas_src>

<mosaic_0001>
module attributes {stable_mosaic.version = 11 : i64} {
  func.func @_linear_bias_permute_kernel(%arg0: memref<5x4xf32, #tpu.memory_space<vmem>>, %arg1: memref<4x4xf32, #tpu.memory_space<vmem>>, %arg2: memref<5x4xf32, #tpu.memory_space<vmem>>) attributes {dimension_semantics = [], scalar_prefetch = 0 : i64, scratch_operands = 0 : i64, tpu.core_type = #tpu.core_type<tc>} {
    %c0 = arith.constant 0 : index
    %c0_0 = arith.constant 0 : index
    %0 = vector.load %arg0[%c0, %c0_0] : memref<5x4xf32, #tpu.memory_space<vmem>>, vector<5x4xf32>
    %c0_1 = arith.constant 0 : index
    %c0_2 = arith.constant 0 : index
    %1 = vector.load %arg1[%c0_1, %c0_2] : memref<4x4xf32, #tpu.memory_space<vmem>>, vector<4x4xf32>
    %2 = vector.extract_strided_slice %0 {offsets = [0, 0], sizes = [5, 1], strides = [1, 1]} : vector<5x4xf32> to vector<5x1xf32>
    %3 = vector.extract_strided_slice %1 {offsets = [0, 0], sizes = [1, 4], strides = [1, 1]} : vector<4x4xf32> to vector<1x4xf32>
    %4 = vector.broadcast %2 : vector<5x1xf32> to vector<5x4xf32>
    %5 = vector.broadcast %3 : vector<1x4xf32> to vector<5x4xf32>
    %6 = arith.mulf %4, %5 : vector<5x4xf32>
    %7 = vector.extract_strided_slice %0 {offsets = [0, 1], sizes = [5, 1], strides = [1, 1]} : vector<5x4xf32> to vector<5x1xf32>
    %8 = vector.extract_strided_slice %1 {offsets = [1, 0], sizes = [1, 4], strides = [1, 1]} : vector<4x4xf32> to vector<1x4xf32>
    %9 = vector.broadcast %7 : vector<5x1xf32> to vector<5x4xf32>
    %10 = vector.broadcast %8 : vector<1x4xf32> to vector<5x4xf32>
    %11 = arith.mulf %9, %10 : vector<5x4xf32>
    %12 = arith.addf %6, %11 : vector<5x4xf32>
    %13 = vector.extract_strided_slice %0 {offsets = [0, 2], sizes = [5, 1], strides = [1, 1]} : vector<5x4xf32> to vector<5x1xf32>
    %14 = vector.extract_strided_slice %1 {offsets = [2, 0], sizes = [1, 4], strides = [1, 1]} : vector<4x4xf32> to vector<1x4xf32>
    %15 = vector.broadcast %13 : vector<5x1xf32> to vector<5x4xf32>
    %16 = vector.broadcast %14 : vector<1x4xf32> to vector<5x4xf32>
    %17 = arith.mulf %15, %16 : vector<5x4xf32>
    %18 = arith.addf %12, %17 : vector<5x4xf32>
    %19 = vector.extract_strided_slice %0 {offsets = [0, 3], sizes = [5, 1], strides = [1, 1]} : vector<5x4xf32> to vector<5x1xf32>
    %20 = vector.extract_strided_slice %1 {offsets = [3, 0], sizes = [1, 4], strides = [1, 1]} : vector<4x4xf32> to vector<1x4xf32>
    %21 = vector.broadcast %19 : vector<5x1xf32> to vector<5x4xf32>
    %22 = vector.broadcast %20 : vector<1x4xf32> to vector<5x4xf32>
    %23 = arith.mulf %21, %22 : vector<5x4xf32>
    %24 = arith.addf %18, %23 : vector<5x4xf32>
    %c0_3 = arith.constant 0 : index
    %c0_4 = arith.constant 0 : index
    %25 = vector.load %arg2[%c0_3, %c0_4] : memref<5x4xf32, #tpu.memory_space<vmem>>, vector<5x4xf32>
    tpu.vector_store %arg2[%c0_3, %c0_4], %24 {strides = array<i32>} : memref<5x4xf32, #tpu.memory_space<vmem>>, vector<5x4xf32>,
    return
  }
}

</mosaic_0001>

<llo_original>
// kernel: tpu_custom_call.1
$region0: #{tpu_custom_call.1}
  #allocation0 [shape = 'u32[]', space=smem, size = 0x4, offset = 0x4, fixed_abs, tag = 'smem constant byte address 0x4 - core index']
  #allocation1 [shape = 'u32[144,128]{1,0:T(1,128)}', space=vmem, size = 0x12000, scoped, tag = 'internal scratch']
  %s0 = inlined_call_operand.vmem [shape: f32[5,4], index: 0, kind: input, shape index: {}]
  %s1 = inlined_call_operand.vmem [shape: f32[4,4], index: 1, kind: input, shape index: {}]
  %s2 = inlined_call_operand.vmem [shape: f32[5,4], index: 2, kind: output, shape index: {}]
  %s3 = sld [smem:[#allocation0]]
  $region18: #{tpu_custom_call.1} parent=0
    _
  %s5 = ssub.s32 1, %s3
  %s6 = scalar_select 0, %s5, %s3
  // Predicated region
  $region2: #{tpu_custom_call.1} parent=0 // pred_check
    _
  $region3: #{tpu_custom_call.1} parent=0 // pred_check_branch
    %8 = sbr.rel (0) target = $region5
  $region4: #{tpu_custom_call.1} parent=0 // pred_region
    _
  $region5: #{tpu_custom_call.1} parent=0 // pred_fallthru
    _
  // Predicated region
  $region6: #{tpu_custom_call.1} parent=0 // pred_check
    _
  $region7: #{tpu_custom_call.1} parent=0 // pred_check_branch
    %10 = sbr.rel (0) target = $region9
  $region8: #{tpu_custom_call.1} parent=0 // pred_region
    _
  $region9: #{tpu_custom_call.1} parent=0 // pred_fallthru
    _
  %v11 = vld [vmem:[%s0] sm:$0x1f]
  %v12 = vld [vmem:[%s1] sm:$0xf]
  %14 = vset.pattern.permute.xlu0 0
  %15 = vperm.xlu0 %14, %v11
  %v16 = vpop.permute.xlu0 %15
  %v18 = vlaneseq
  %v19 = vshrl.u32 %v18, 7
  %v20 = vsub.s32 0, %v19
  %v21 = vrot.slane %v12, %v20
  %v22 = vmul.f32 %v16, %v21
  %23 = vset.pattern.permute.xlu0 1
  %24 = vperm.xlu0 %23, %v11
  %v25 = vpop.permute.xlu0 %24
  %v27 = vlaneseq
  %v28 = vshrl.u32 %v27, 7
  %v29 = vsub.s32 1, %v28
  %v30 = vrot.slane %v12, %v29
  %v31 = vmul.f32 %v25, %v30
  %v32 = vadd.f32 %v22, %v31
  %33 = vset.pattern.permute.xlu0 2
  %34 = vperm.xlu0 %33, %v11
  %v35 = vpop.permute.xlu0 %34
  %v37 = vlaneseq
  %v38 = vshrl.u32 %v37, 7
  %v39 = vsub.s32 2, %v38
  %v40 = vrot.slane %v12, %v39
  %v41 = vmul.f32 %v35, %v40
  %v42 = vadd.f32 %v32, %v41
  %43 = vset.pattern.permute.xlu0 3
  %44 = vperm.xlu0 %43, %v11
  %v45 = vpop.permute.xlu0 %44
  %v47 = vlaneseq
  %v48 = vshrl.u32 %v47, 7
  %v49 = vsub.s32 3, %v48
  %v50 = vrot.slane %v12, %v49
  %v51 = vmul.f32 %v45, %v50
  %v52 = vadd.f32 %v42, %v51
  %vm53 = vcmask 28672
  %54 = vst.msk [vmem:[%s2] sm:$0x1f] %vm53, %v52
  // Predicated region
  $region10: #{tpu_custom_call.1} parent=0 // pred_check
    _
  $region11: #{tpu_custom_call.1} parent=0 // pred_check_branch
    %56 = sbr.rel (0) target = $region13
  $region12: #{tpu_custom_call.1} parent=0 // pred_region
    _
  $region13: #{tpu_custom_call.1} parent=0 // pred_fallthru
    _
  // Predicated region
  $region14: #{tpu_custom_call.1} parent=0 // pred_check
    _
  $region15: #{tpu_custom_call.1} parent=0 // pred_check_branch
    %58 = sbr.rel (0) target = $region17
  $region16: #{tpu_custom_call.1} parent=0 // pred_region
    _
  $region17: #{tpu_custom_call.1} parent=0 // pred_fallthru
    _

</llo_original>
